<compile_context>
chip_gen: v7x
topology: tpu7x:2x2x1
jax: 0.10.0
libtpu: 0.0.40
codegen_flags: <defaults>
</compile_context>

<pallas_src>
import jax
import jax.numpy as jnp
from jax.experimental import pallas as pl
from jax.experimental.pallas import tpu as pltpu

HIDDEN = 128


def _round_up(x, m):
    return ((x + m - 1) // m) * m


def qvalue_kernel(s_ref, a_ref, w1s_ref, w1a_ref, b1_ref, w2t_ref, b2_ref,
                  w3_ref, b3_ref, out_ref):
    cd = w2t_ref.dtype  # matmul-operand dtype (bf16 by default, f32 optional)

    # Layer 1 with fused concat: state @ W1_s + action @ W1_a + b1, then ReLU.
    # The f32 -> compute-dtype cast happens here, in VMEM, not in the wrapper.
    h1 = (jnp.dot(s_ref[...].astype(cd), w1s_ref[...],
                  preferred_element_type=jnp.float32)
          + jnp.dot(a_ref[...].astype(cd), w1a_ref[...],
                    preferred_element_type=jnp.float32)
          + b1_ref[...])
    h1 = jnp.maximum(h1, 0.0)                                  # (tb, 128) f32

    # Switch to (feature, batch) orientation with one tile-aligned XLU transpose
    # so the rest of the network (and the output row) is lane-dense in batch.
    h1t = jnp.transpose(h1).astype(cd)                         # (128, tb)

    # Layer 2: W2^T (128,128) @ h1^T (128,tb) + b2 column, ReLU. f32 accumulate.
    h2t = (jnp.dot(w2t_ref[...], h1t, preferred_element_type=jnp.float32)
           + b2_ref[...])
    h2t = jnp.maximum(h2t, 0.0)                                # (128, tb) f32

    # Layer 3 head (128 -> 1), kept in f32: (1,128) @ (128,tb) -> lane-dense row.
    q_row = (jnp.dot(w3_ref[...], h2t, preferred_element_type=jnp.float32)
             + b3_ref[0, 0])                                   # (1, tb)
    out_ref[...] = q_row.astype(out_ref.dtype)


def qvalue_forward(state, action, params, *, block_batch=1024, min_grid_steps=2,
                   compute_dtype=jnp.bfloat16):
    """Fused Pallas forward. state: (B, S), action: (B, A) -> q: (B, 1).

    compute_dtype controls the matmul operands only; accumulation, biases, ReLU
    and the final 128->1 head stay f32.
    """
    w1s, w1a, b1, w2t, b2, w3, b3 = params
    B, S = state.shape
    A = action.shape[1]

    # Weights cast once outside the hot loop; activations cast in-kernel.
    w1s = w1s.astype(compute_dtype)
    w1a = w1a.astype(compute_dtype)
    w2t = w2t.astype(compute_dtype)
    b1 = b1.astype(jnp.float32).reshape(1, HIDDEN)
    b2 = b2.astype(jnp.float32).reshape(HIDDEN, 1)
    w3 = w3.astype(jnp.float32).reshape(1, HIDDEN)
    b3 = b3.astype(jnp.float32).reshape(1, 1)

    # Batch tile: aim for >= min_grid_steps grid steps (v7x megacore sharding),
    # lane-aligned (multiple of 128) whenever B is large so stores are dense.
    if B <= 128:
        tb = _round_up(B, 8)                       # single tile; too small to split
    else:
        tb = _round_up(pl.cdiv(B, min_grid_steps), 128)
        tb = max(128, min(tb, block_batch, _round_up(B, 128)))
    num_tiles = pl.cdiv(B, tb)

    const = lambda i: (0, 0)           # weights/biases: fetched once, stay resident
    w_itemsize = jnp.dtype(compute_dtype).itemsize
    in_itemsize = jnp.dtype(state.dtype).itemsize

    flops = 2 * B * ((S + A) * HIDDEN + HIDDEN * HIDDEN + HIDDEN)
    bytes_accessed = (
        B * (S + A) * in_itemsize                              # activation stream
        + ((S + A) * HIDDEN + HIDDEN * HIDDEN) * w_itemsize    # big weights
        + (3 * HIDDEN + 2) * 4                                 # biases + w3 + b3
        + num_tiles * tb * 4)                                  # lane-dense q out

    # Real VMEM footprint (double-buffered I/O tiles + resident weights + f32
    # intermediates) with ~2x headroom, instead of a blanket 32 MiB.
    vmem_bytes = (
        2 * tb * (S + A) * in_itemsize
        + ((S + A) * HIDDEN + HIDDEN * HIDDEN) * w_itemsize
        + (3 * HIDDEN + 2) * 4
        + 4 * tb * HIDDEN * 4
        + 2 * tb * 4)
    vmem_limit = int(max(4 * 1024 * 1024, 2 * vmem_bytes))

    out = pl.pallas_call(
        qvalue_kernel,
        out_shape=jax.ShapeDtypeStruct((num_tiles, 1, tb), jnp.float32),
        grid=(num_tiles,),
        in_specs=[
            pl.BlockSpec((tb, S), lambda i: (i, 0)),            # state tile
            pl.BlockSpec((tb, A), lambda i: (i, 0)),            # action tile
            pl.BlockSpec((S, HIDDEN), const),                   # W1_state  (in,out)
            pl.BlockSpec((A, HIDDEN), const),                   # W1_action (in,out)
            pl.BlockSpec((1, HIDDEN), const),                   # b1 row
            pl.BlockSpec((HIDDEN, HIDDEN), const),              # W2^T (out,in)
            pl.BlockSpec((HIDDEN, 1), const),                   # b2 column
            pl.BlockSpec((1, HIDDEN), const),                   # W3 row (out,in)
            pl.BlockSpec(memory_space=pltpu.MemorySpace.SMEM),  # b3 scalar
        ],
        out_specs=pl.BlockSpec((None, 1, tb), lambda i: (i, 0, 0)),
        compiler_params=pltpu.CompilerParams(
            dimension_semantics=("parallel",),
            vmem_limit_bytes=vmem_limit,
        ),
        cost_estimate=pl.CostEstimate(
            flops=flops, transcendentals=0, bytes_accessed=bytes_accessed),
    )(state, action, w1s, w1a, b1, w2t, b2, w3, b3)

    # (num_tiles, 1, tb) lane-dense rows -> (B, 1); padded lanes are dropped.
    return out.reshape(-1)[:B].reshape(B, 1)


def init_params(key, state_dim, action_dim, normal=1e-3):
    """Mirrors nn.Linear default init + uniform(-normal, normal) override on layer3.
    Storage: W1 split by input (state/action) in (in, out) layout; W2 and W3 in
    PyTorch (out, in) layout (used directly by the kernel's transposed tail);
    b2 stored as a column."""
    in_dim = state_dim + action_dim
    k = jax.random.split(key, 6)

    def uniform(kk, shape, bound):
        return jax.random.uniform(kk, shape, jnp.float32, -bound, bound)

    b1_bound = 1.0 / (in_dim ** 0.5)
    b2_bound = 1.0 / (HIDDEN ** 0.5)
    w1 = uniform(k[0], (in_dim, HIDDEN), b1_bound)
    b1 = uniform(k[1], (1, HIDDEN), b1_bound)
    w1s, w1a = w1[:state_dim], w1[state_dim:]
    w2t = uniform(k[2], (HIDDEN, HIDDEN), b2_bound)   # (out, in)
    b2 = uniform(k[3], (HIDDEN, 1), b2_bound)         # column
    w3 = uniform(k[4], (1, HIDDEN), normal)           # (out, in)
    b3 = uniform(k[5], (1, 1), normal)
    return (w1s, w1a, b1, w2t, b2, w3, b3)


def qvalue_reference(state, action, params):
    """Pure-JAX reference for correctness checks."""
    w1s, w1a, b1, w2t, b2, w3, b3 = params
    x = jnp.maximum(state @ w1s + action @ w1a + b1, 0.0)
    x = jnp.maximum(x @ w2t.T + b2.T, 0.0)
    return x @ w3.T + b3


if __name__ == "__main__":
    STATE_DIM, ACTION_DIM = 16, 4
    key = jax.random.PRNGKey(0)
    k_state, k_action, k_params = jax.random.split(key, 3)
    params = init_params(k_params, STATE_DIM, ACTION_DIM)

    # 1) Small single-tile case (grid = 1), full-f32 path, tight tolerance.
    B = 8
    state = jax.random.normal(k_state, (B, STATE_DIM), jnp.float32)
    action = jax.random.normal(k_action, (B, ACTION_DIM), jnp.float32)
    q = jax.block_until_ready(
        qvalue_forward(state, action, params, compute_dtype=jnp.float32))
    q_ref = qvalue_reference(state, action, params)
    assert q.shape == (B, 1)
    assert jnp.allclose(q, q_ref, atol=5e-5, rtol=1e-4), "f32 single-tile mismatch"

    # 2) Multi-tile case (grid = 2, resident weights) with a ragged last tile,
    #    f32 path, tight tolerance.
    B2 = 200
    state2 = jax.random.normal(k_state, (B2, STATE_DIM), jnp.float32)
    action2 = jax.random.normal(k_action, (B2, ACTION_DIM), jnp.float32)
    q2 = jax.block_until_ready(
        qvalue_forward(state2, action2, params, compute_dtype=jnp.float32))
    q2_ref = qvalue_reference(state2, action2, params)
    assert q2.shape == (B2, 1)
    assert jnp.allclose(q2, q2_ref, atol=5e-5, rtol=1e-4), "f32 multi-tile mismatch"

    # 3) Default bf16 matmul-operand path (f32 accumulation), looser tolerance.
    B3 = 256
    state3 = jax.random.normal(k_state, (B3, STATE_DIM), jnp.float32)
    action3 = jax.random.normal(k_action, (B3, ACTION_DIM), jnp.float32)
    q3 = jax.block_until_ready(qvalue_forward(state3, action3, params))
    q3_ref = qvalue_reference(state3, action3, params)
    assert q3.shape == (B3, 1)
    assert jnp.allclose(q3, q3_ref, atol=2e-3, rtol=5e-2), "bf16 path mismatch"

    print("KERNEL_OK")
</pallas_src>

<mosaic_0001>
module attributes {stable_mosaic.version = 11 : i64} {
  func.func @qvalue_kernel(%arg0: i32, %arg1: memref<8x16xf32, #tpu.memory_space<vmem>>, %arg2: memref<8x4xf32, #tpu.memory_space<vmem>>, %arg3: memref<16x128xf32, #tpu.memory_space<vmem>>, %arg4: memref<4x128xf32, #tpu.memory_space<vmem>>, %arg5: memref<1x128xf32, #tpu.memory_space<vmem>>, %arg6: memref<128x128xf32, #tpu.memory_space<vmem>>, %arg7: memref<128x1xf32, #tpu.memory_space<vmem>>, %arg8: memref<1x128xf32, #tpu.memory_space<vmem>>, %arg9: memref<1x1xf32, #tpu.memory_space<smem>>, %arg10: memref<1x1x8xf32, #tpu.memory_space<vmem>>) attributes {dimension_semantics = [#tpu.dimension_semantics<parallel>], iteration_bounds = array<i64: 1>, scalar_prefetch = 0 : i64, scratch_operands = 0 : i64, tpu.core_type = #tpu.core_type<tc>, window_params = [{transform_indices = @transform_0, window_bounds = array<i64: 8, 16>}, {transform_indices = @transform_1, window_bounds = array<i64: 8, 4>}, {pipeline_mode = #tpu.pipeline_mode<synchronous>, transform_indices = @transform_2, window_bounds = array<i64: 16, 128>}, {pipeline_mode = #tpu.pipeline_mode<synchronous>, transform_indices = @transform_3, window_bounds = array<i64: 4, 128>}, {pipeline_mode = #tpu.pipeline_mode<synchronous>, transform_indices = @transform_4, window_bounds = array<i64: 1, 128>}, {pipeline_mode = #tpu.pipeline_mode<synchronous>, transform_indices = @transform_5, window_bounds = array<i64: 128, 128>}, {pipeline_mode = #tpu.pipeline_mode<synchronous>, transform_indices = @transform_6, window_bounds = array<i64: 128, 1>}, {pipeline_mode = #tpu.pipeline_mode<synchronous>, transform_indices = @transform_7, window_bounds = array<i64: 1, 128>}, {transform_indices = @transform_8, window_bounds = array<i64: 1, 1>}, {transform_indices = @transform_9, window_bounds = array<i64: 1, 1, 8>}]} {
    %c0 = arith.constant 0 : index
    %c0_0 = arith.constant 0 : index
    %0 = vector.load %arg1[%c0, %c0_0] : memref<8x16xf32, #tpu.memory_space<vmem>>, vector<8x16xf32>
    %c0_1 = arith.constant 0 : index
    %c0_2 = arith.constant 0 : index
    %1 = vector.load %arg3[%c0_1, %c0_2] : memref<16x128xf32, #tpu.memory_space<vmem>>, vector<16x128xf32>
    %cst = arith.constant dense<0.000000e+00> : vector<8x128xf32>
    %2 = tpu.matmul %0, %1, %cst {dimension_numbers = #tpu.dot_dimension_numbers<[1], [0], [0], [1], [0, 0, 1, 1], [], []>} : vector<8x16xf32>, vector<16x128xf32>, vector<8x128xf32> -> vector<8x128xf32>
    %c0_3 = arith.constant 0 : index
    %c0_4 = arith.constant 0 : index
    %3 = vector.load %arg2[%c0_3, %c0_4] : memref<8x4xf32, #tpu.memory_space<vmem>>, vector<8x4xf32>
    %c0_5 = arith.constant 0 : index
    %c0_6 = arith.constant 0 : index
    %4 = vector.load %arg4[%c0_5, %c0_6] : memref<4x128xf32, #tpu.memory_space<vmem>>, vector<4x128xf32>
    %cst_7 = arith.constant dense<0.000000e+00> : vector<8x128xf32>
    %5 = tpu.matmul %3, %4, %cst_7 {dimension_numbers = #tpu.dot_dimension_numbers<[1], [0], [0], [1], [0, 0, 1, 1], [], []>} : vector<8x4xf32>, vector<4x128xf32>, vector<8x128xf32> -> vector<8x128xf32>
    %6 = arith.addf %2, %5 : vector<8x128xf32>
    %c0_8 = arith.constant 0 : index
    %c0_9 = arith.constant 0 : index
    %7 = vector.load %arg5[%c0_8, %c0_9] : memref<1x128xf32, #tpu.memory_space<vmem>>, vector<1x128xf32>
    %8 = vector.broadcast %7 : vector<1x128xf32> to vector<8x128xf32>
    %9 = arith.addf %6, %8 : vector<8x128xf32>
    %cst_10 = arith.constant 0.000000e+00 : f32
    %10 = vector.broadcast %cst_10 : f32 to vector<8x128xf32>
    %11 = arith.maximumf %9, %10 : vector<8x128xf32>
    %12 = tpu.transpose %11, [1, 0] : vector<8x128xf32> -> vector<128x8xf32>
    %c0_11 = arith.constant 0 : index
    %c0_12 = arith.constant 0 : index
    %13 = vector.load %arg6[%c0_11, %c0_12] : memref<128x128xf32, #tpu.memory_space<vmem>>, vector<128x128xf32>
    %cst_13 = arith.constant dense<0.000000e+00> : vector<128x8xf32>
    %14 = tpu.matmul %13, %12, %cst_13 {dimension_numbers = #tpu.dot_dimension_numbers<[1], [0], [0], [1], [0, 0, 1, 1], [], []>} : vector<128x128xf32>, vector<128x8xf32>, vector<128x8xf32> -> vector<128x8xf32>
    %c0_14 = arith.constant 0 : index
    %c0_15 = arith.constant 0 : index
    %15 = vector.load %arg7[%c0_14, %c0_15] : memref<128x1xf32, #tpu.memory_space<vmem>>, vector<128x1xf32>
    %16 = vector.broadcast %15 : vector<128x1xf32> to vector<128x8xf32>
    %17 = arith.addf %14, %16 : vector<128x8xf32>
    %cst_16 = arith.constant 0.000000e+00 : f32
    %18 = vector.broadcast %cst_16 : f32 to vector<128x8xf32>
    %19 = arith.maximumf %17, %18 : vector<128x8xf32>
    %c0_17 = arith.constant 0 : index
    %c0_18 = arith.constant 0 : index
    %20 = vector.load %arg8[%c0_17, %c0_18] : memref<1x128xf32, #tpu.memory_space<vmem>>, vector<1x128xf32>
    %cst_19 = arith.constant dense<0.000000e+00> : vector<1x8xf32>
    %21 = tpu.matmul %20, %19, %cst_19 {dimension_numbers = #tpu.dot_dimension_numbers<[1], [0], [0], [1], [0, 0, 1, 1], [], []>} : vector<1x128xf32>, vector<128x8xf32>, vector<1x8xf32> -> vector<1x8xf32>
    %c0_20 = arith.constant 0 : index
    %c0_21 = arith.constant 0 : index
    %22 = memref.load %arg9[%c0_20, %c0_21] : memref<1x1xf32, #tpu.memory_space<smem>>
    %23 = vector.broadcast %22 : f32 to vector<1x8xf32>
    %24 = arith.addf %21, %23 : vector<1x8xf32>
    %c0_22 = arith.constant 0 : index
    %c0_23 = arith.constant 0 : index
    %c0_24 = arith.constant 0 : index
    %25 = vector.load %arg10[%c0_22, %c0_23, %c0_24] : memref<1x1x8xf32, #tpu.memory_space<vmem>>, vector<1x1x8xf32>
    %26 = vector.shape_cast %25 : vector<1x1x8xf32> to vector<1x8xf32>
    %27 = vector.shape_cast %24 : vector<1x8xf32> to vector<1x1x8xf32>
    tpu.vector_store %arg10[%c0_22, %c0_23, %c0_24], %27 {strides = array<i32>} : memref<1x1x8xf32, #tpu.memory_space<vmem>>, vector<1x1x8xf32>,
    return
  }
  func.func @transform_0(%arg0: i32) -> (i32, i32) {
    %c0_i32 = arith.constant 0 : i32
    %c0_i32_0 = arith.constant 0 : i32
    return %arg0, %c0_i32 : i32, i32
  }
  func.func @transform_1(%arg0: i32) -> (i32, i32) {
    %c0_i32 = arith.constant 0 : i32
    %c0_i32_0 = arith.constant 0 : i32
    return %arg0, %c0_i32 : i32, i32
  }
  func.func @transform_2(%arg0: i32) -> (i32, i32) {
    %c0_i32 = arith.constant 0 : i32
    %c0_i32_0 = arith.constant 0 : i32
    %c0_i32_1 = arith.constant 0 : i32
    return %c0_i32, %c0_i32_0 : i32, i32
  }
  func.func @transform_3(%arg0: i32) -> (i32, i32) {
    %c0_i32 = arith.constant 0 : i32
    %c0_i32_0 = arith.constant 0 : i32
    %c0_i32_1 = arith.constant 0 : i32
    return %c0_i32, %c0_i32_0 : i32, i32
  }
  func.func @transform_4(%arg0: i32) -> (i32, i32) {
    %c0_i32 = arith.constant 0 : i32
    %c0_i32_0 = arith.constant 0 : i32
    %c0_i32_1 = arith.constant 0 : i32
    return %c0_i32, %c0_i32_0 : i32, i32
  }
  func.func @transform_5(%arg0: i32) -> (i32, i32) {
    %c0_i32 = arith.constant 0 : i32
    %c0_i32_0 = arith.constant 0 : i32
    %c0_i32_1 = arith.constant 0 : i32
    return %c0_i32, %c0_i32_0 : i32, i32
  }
  func.func @transform_6(%arg0: i32) -> (i32, i32) {
    %c0_i32 = arith.constant 0 : i32
    %c0_i32_0 = arith.constant 0 : i32
    %c0_i32_1 = arith.constant 0 : i32
    return %c0_i32, %c0_i32_0 : i32, i32
  }
  func.func @transform_7(%arg0: i32) -> (i32, i32) {
    %c0_i32 = arith.constant 0 : i32
    %c0_i32_0 = arith.constant 0 : i32
    %c0_i32_1 = arith.constant 0 : i32
    return %c0_i32, %c0_i32_0 : i32, i32
  }
  func.func @transform_8(%arg0: i32) -> (i32, i32) {
    %c0_i32 = arith.constant 0 : i32
    %c0_i32_0 = arith.constant 0 : i32
    %c0_i32_1 = arith.constant 0 : i32
    return %c0_i32, %c0_i32_0 : i32, i32
  }
  func.func @transform_9(%arg0: i32) -> (i32, i32, i32) {
    %c0_i32 = arith.constant 0 : i32
    %c0_i32_0 = arith.constant 0 : i32
    %c0_i32_1 = arith.constant 0 : i32
    return %arg0, %c0_i32, %c0_i32_0 : i32, i32, i32
  }
}

</mosaic_0001>

<llo_original>
// kernel: tpu_custom_call.1
$region0: #{tpu_custom_call.1}
  #allocation0 [shape = 'u32[]', space=smem, size = 0x4, offset = 0x4, fixed_abs, tag = 'smem constant byte address 0x4 - core index']
  #allocation1 [shape = 'u32[144,128]{1,0:T(1,128)}', space=vmem, size = 0x12000, scoped, tag = 'internal scratch']
  #allocation2 [shape = 'f32[1,1]{1,0:T(1,128)S(6)}', space=smem, size = 0x200, scoped, tag = 'scoped memory for tpu_custom_call.1']
  %s0 = inlined_call_operand.vmem [shape: f32[8,16], index: 0, kind: input, shape index: {}]
  %s1 = inlined_call_operand.vmem [shape: f32[8,4], index: 1, kind: input, shape index: {}]
  %s2 = inlined_call_operand.vmem [shape: f32[16,128], index: 2, kind: input, shape index: {}]
  %s3 = inlined_call_operand.vmem [shape: f32[4,128], index: 3, kind: input, shape index: {}]
  %s4 = inlined_call_operand.vmem [shape: f32[1,128], index: 4, kind: input, shape index: {}]
  %s5 = inlined_call_operand.vmem [shape: f32[128,128], index: 5, kind: input, shape index: {}]
  %s6 = inlined_call_operand.vmem [shape: f32[128,1], index: 6, kind: input, shape index: {}]
  %s7 = inlined_call_operand.vmem [shape: f32[1,128], index: 7, kind: input, shape index: {}]
  %s8 = inlined_call_operand.<no memory space> [shape: f32[1,1], index: 8, kind: input, shape index: {}]
  %s9 = inlined_call_operand.hbm [shape: f32[1,1,8], index: 9, kind: output, shape index: {}]
  %s10 = sld [smem:[#allocation0]]
  $region46: #{tpu_custom_call.1} parent=0
    _
  %s12 = ssub.s32 1, %s10
  %s13 = scalar_select 0, %s12, %s10
  %14 = sst [smem:[#allocation2]] %s8
  $region1: #{tpu_custom_call.1} parent=0
    #allocation3 [shape = 'u8[512]{0}', space=vmem, size = 0x400, scoped, tag = 'output window, operand 0, single buffered']
    #allocation4 [shape = 's32[1]{0}', space=sflag, size = 0x4, scoped, tag = 'scoped memory for tpu_custom_call.1']
    %15 = vsyncpa [#allocation4], 0
    // Predicated region
    $region2: #{tpu_custom_call.1} parent=1 // pred_check
      _
    $region3: #{tpu_custom_call.1} parent=1 // pred_check_branch
      %17 = sbr.rel (0) target = $region5
    $region4: #{tpu_custom_call.1} parent=1 // pred_region
      _
    $region5: #{tpu_custom_call.1} parent=1 // pred_fallthru
      _
    // Predicated region
    $region6: #{tpu_custom_call.1} parent=1 // pred_check
      _
    $region7: #{tpu_custom_call.1} parent=1 // pred_check_branch
      %19 = sbr.rel (0) target = $region9
    $region8: #{tpu_custom_call.1} parent=1 // pred_region
      _
    $region9: #{tpu_custom_call.1} parent=1 // pred_fallthru
      _
    // Predicated region
    $region10: #{tpu_custom_call.1} parent=1 // pred_check
      _
    $region11: #{tpu_custom_call.1} parent=1 // pred_check_branch
      %21 = sbr.rel (0) target = $region13
    $region12: #{tpu_custom_call.1} parent=1 // pred_region
      _
    $region13: #{tpu_custom_call.1} parent=1 // pred_fallthru
      _
    // Predicated region
    $region14: #{tpu_custom_call.1} parent=1 // pred_check
      _
    $region15: #{tpu_custom_call.1} parent=1 // pred_check_branch
      %23 = sbr.rel (0) target = $region17
    $region16: #{tpu_custom_call.1} parent=1 // pred_region
      _
    $region17: #{tpu_custom_call.1} parent=1 // pred_fallthru
      _
    // Predicated region
    $region18: #{tpu_custom_call.1} parent=1 // pred_check
      _
    $region19: #{tpu_custom_call.1} parent=1 // pred_check_branch
      %25 = sbr.rel (0) target = $region21
    $region20: #{tpu_custom_call.1} parent=1 // pred_region
      _
    $region21: #{tpu_custom_call.1} parent=1 // pred_fallthru
      _
    // Predicated region
    $region22: #{tpu_custom_call.1} parent=1 // pred_check
      _
    $region23: #{tpu_custom_call.1} parent=1 // pred_check_branch
      %27 = sbr.rel (0) target = $region25
    $region24: #{tpu_custom_call.1} parent=1 // pred_region
      _
    $region25: #{tpu_custom_call.1} parent=1 // pred_fallthru
      _
    // Predicated region
    $region26: #{tpu_custom_call.1} parent=1 // pred_check
      _
    $region27: #{tpu_custom_call.1} parent=1 // pred_check_branch
      %29 = sbr.rel (0) target = $region29
    $region28: #{tpu_custom_call.1} parent=1 // pred_region
      _
    $region29: #{tpu_custom_call.1} parent=1 // pred_fallthru
      _
    // Predicated region
    $region30: #{tpu_custom_call.1} parent=1 // pred_check
      _
    $region31: #{tpu_custom_call.1} parent=1 // pred_check_branch
      %31 = sbr.rel (0) target = $region33
    $region32: #{tpu_custom_call.1} parent=1 // pred_region
      _
    $region33: #{tpu_custom_call.1} parent=1 // pred_fallthru
      _
    // Predicated region
    $region34: #{tpu_custom_call.1} parent=1 // pred_check
      _
    $region35: #{tpu_custom_call.1} parent=1 // pred_check_branch
      %33 = sbr.rel (0) target = $region37
    $region36: #{tpu_custom_call.1} parent=1 // pred_region
      _
    $region37: #{tpu_custom_call.1} parent=1 // pred_fallthru
      _
    %v34 = vld [vmem:[%s0] sm:$0xff]
    %v35 = vld [vmem:[%s2] sm:$0xff]
    %v36 = vld [vmem:[%s2 + $0x8] sm:$0xff]
    %v37 = vld [vmem:[%s1] sm:$0xff]
    %v38 = vld [vmem:[%s3] sm:$0xf]
    %vm39 = vcmask 31744
    %v41 = vsel %vm39, %v37, 0
    %vm43 = vcmask 1043456
    %v45 = vsel %vm43, %v38, 0
    %47 = vmatprep.subr.mxu0 0.0
    %48 = vmatpush1.msra.mxu0 %v45
    %49 = vmatprep.subr.mxu0 0.0
    %50 = vmatpush1.msra.mxu0 0.0
    %51 = vmatprep.subr.mxu0 0.0
    %52 = vmatpush1.msra.mxu0 0.0
    %53 = vmatprep.subr.mxu0 0.0
    %54 = vmatpush1.msra.mxu0 0.0
    %55 = vmatprep.subr.mxu0 0.0
    %56 = vmatpush1.msra.mxu0 0.0
    %57 = vmatprep.subr.mxu0 0.0
    %58 = vmatpush1.msra.mxu0 0.0
    %59 = vmatprep.subr.mxu0 0.0
    %60 = vmatpush1.msra.mxu0 0.0
    %61 = vmatprep.subr.mxu0 0.0
    %62 = vmatpush1.msra.mxu0 0.0
    %63 = vmatprep.subr.mxu0 0.0
    %64 = vmatpush1.msra.mxu0 0.0
    %65 = vmatprep.subr.mxu0 0.0
    %66 = vmatpush1.msra.mxu0 0.0
    %67 = vmatprep.subr.mxu0 0.0
    %68 = vmatpush1.msra.mxu0 0.0
    %69 = vmatprep.subr.mxu0 0.0
    %70 = vmatpush1.msra.mxu0 0.0
    %71 = vmatprep.subr.mxu0 0.0
    %72 = vmatpush1.msra.mxu0 0.0
    %73 = vmatprep.subr.mxu0 0.0
    %74 = vmatpush1.msra.mxu0 0.0
    %75 = vmatprep.subr.mxu0 0.0
    %76 = vmatpush1.msra.mxu0 0.0
    %77 = vmatprep.subr.mxu0 0.0
    %78 = vmatpush1.msra.mxu0 0.0
    %79 = vmatprep.subr.mxu0 0.0
    %80 = vmatpush1.msra.mxu0 0.0
    %81 = vmatprep.subr.mxu0 0.0
    %82 = vmatpush1.msra.mxu0 0.0
    %83 = vmatprep.subr.mxu0 0.0
    %84 = vmatpush1.msra.mxu0 0.0
    %85 = vmatprep.subr.mxu0 0.0
    %86 = vmatpush1.msra.mxu0 0.0
    %87 = vmatprep.subr.mxu0 0.0
    %88 = vmatpush1.msra.mxu0 0.0
    %89 = vmatprep.subr.mxu0 0.0
    %90 = vmatpush1.msra.mxu0 0.0
    %91 = vmatprep.subr.mxu0 0.0
    %92 = vmatpush1.msra.mxu0 0.0
    %93 = vmatprep.subr.mxu0 0.0
    %94 = vmatpush1.msra.mxu0 0.0
    %95 = vmatprep.subr.mxu0 0.0
    %96 = vmatpush1.msra.mxu0 0.0
    %97 = vmatprep.subr.mxu0 0.0
    %98 = vmatpush1.msra.mxu0 0.0
    %99 = vmatprep.subr.mxu0 0.0
    %100 = vmatpush1.msra.mxu0 0.0
    %101 = vmatprep.subr.mxu0 0.0
    %102 = vmatpush1.msra.mxu0 0.0
    %103 = vmatprep.subr.mxu0 0.0
    %104 = vmatpush1.msra.mxu0 0.0
    %105 = vmatprep.subr.mxu0 0.0
    %106 = vmatpush1.msra.mxu0 0.0
    %107 = vmatprep.subr.mxu0 0.0
    %108 = vmatpush1.msra.mxu0 0.0
    %109 = vmatprep.subr.mxu0 0.0
    %110 = vmatpush1.msra.mxu0 0.0
    %111 = vmatprep.mubr.f32.mxu0 0.0
    %112 = vmatmul.mubr.f32.gmra.mrb[0].mxu0 %v41
    %v113 = vpop.f32.mrb[0].mxu0
    %v114 = vadd.f32 0.0, %v113
    %v115 = vpop.f32.mrb[0].mxu0
    %116 = vdwg.mxu0
    %vm117 = vcmask 130048
    %v119 = vsel %vm117, %v34, 0
    %121 = vmatprep.subr.mxu0 0.0
    %122 = vmatpush1.msra.mxu0 %v35
    %123 = vmatprep.subr.mxu0 0.0
    %124 = vmatpush1.msra.mxu0 %v36
    %125 = vmatprep.subr.mxu0 0.0
    %126 = vmatpush1.msra.mxu0 0.0
    %127 = vmatprep.subr.mxu0 0.0
    %128 = vmatpush1.msra.mxu0 0.0
    %129 = vmatprep.subr.mxu0 0.0
    %130 = vmatpush1.msra.mxu0 0.0
    %131 = vmatprep.subr.mxu0 0.0
    %132 = vmatpush1.msra.mxu0 0.0
    %133 = vmatprep.subr.mxu0 0.0
    %134 = vmatpush1.msra.mxu0 0.0
    %135 = vmatprep.subr.mxu0 0.0
    %136 = vmatpush1.msra.mxu0 0.0
    %137 = vmatprep.subr.mxu0 0.0
    %138 = vmatpush1.msra.mxu0 0.0
    %139 = vmatprep.subr.mxu0 0.0
    %140 = vmatpush1.msra.mxu0 0.0
    %141 = vmatprep.subr.mxu0 0.0
    %142 = vmatpush1.msra.mxu0 0.0
    %143 = vmatprep.subr.mxu0 0.0
    %144 = vmatpush1.msra.mxu0 0.0
    %145 = vmatprep.subr.mxu0 0.0
    %146 = vmatpush1.msra.mxu0 0.0
    %147 = vmatprep.subr.mxu0 0.0
    %148 = vmatpush1.msra.mxu0 0.0
    %149 = vmatprep.subr.mxu0 0.0
    %150 = vmatpush1.msra.mxu0 0.0
    %151 = vmatprep.subr.mxu0 0.0
    %152 = vmatpush1.msra.mxu0 0.0
    %153 = vmatprep.subr.mxu0 0.0
    %154 = vmatpush1.msra.mxu0 0.0
    %155 = vmatprep.subr.mxu0 0.0
    %156 = vmatpush1.msra.mxu0 0.0
    %157 = vmatprep.subr.mxu0 0.0
    %158 = vmatpush1.msra.mxu0 0.0
    %159 = vmatprep.subr.mxu0 0.0
    %160 = vmatpush1.msra.mxu0 0.0
    %161 = vmatprep.subr.mxu0 0.0
    %162 = vmatpush1.msra.mxu0 0.0
    %163 = vmatprep.subr.mxu0 0.0
    %164 = vmatpush1.msra.mxu0 0.0
    %165 = vmatprep.subr.mxu0 0.0
    %166 = vmatpush1.msra.mxu0 0.0
    %167 = vmatprep.subr.mxu0 0.0
    %168 = vmatpush1.msra.mxu0 0.0
    %169 = vmatprep.subr.mxu0 0.0
    %170 = vmatpush1.msra.mxu0 0.0
    %171 = vmatprep.subr.mxu0 0.0
    %172 = vmatpush1.msra.mxu0 0.0
    %173 = vmatprep.subr.mxu0 0.0
    %174 = vmatpush1.msra.mxu0 0.0
    %175 = vmatprep.subr.mxu0 0.0
    %176 = vmatpush1.msra.mxu0 0.0
    %177 = vmatprep.subr.mxu0 0.0
    %178 = vmatpush1.msra.mxu0 0.0
    %179 = vmatprep.subr.mxu0 0.0
    %180 = vmatpush1.msra.mxu0 0.0
    %181 = vmatprep.subr.mxu0 0.0
    %182 = vmatpush1.msra.mxu0 0.0
    %183 = vmatprep.subr.mxu0 0.0
    %184 = vmatpush1.msra.mxu0 0.0
    %185 = vmatprep.mubr.f32.mxu0 0.0
    %186 = vmatmul.mubr.f32.gmra.mrb[0].mxu0 %v119
    %v187 = vpop.f32.mrb[0].mxu0
    %v188 = vadd.f32 %v114, %v187
    %v189 = vpop.f32.mrb[0].mxu0
    %190 = vdwg.mxu0
    %v191 = vld [vmem:[%s4] sm:$0x1]
    %v193 = vlaneseq
    %v194 = vshrl.u32 %v193, 7
    %v195 = vsub.s32 0, %v194
    %v196 = vrot.slane %v191, %v195
    %v198 = vadd.f32 %v188, %v196
    %v199 = vmax.f32 %v198, 0.0
    %v200 = vld [vmem:[%s5] sm:$0xff]
    %v201 = vld [vmem:[%s5 + $0x8] sm:$0xff]
    %v202 = vld [vmem:[%s5 + $0x10] sm:$0xff]
    %v203 = vld [vmem:[%s5 + $0x18] sm:$0xff]
    %v204 = vld [vmem:[%s5 + $0x20] sm:$0xff]
    %v205 = vld [vmem:[%s5 + $0x28] sm:$0xff]
    %v206 = vld [vmem:[%s5 + $0x30] sm:$0xff]
    %v207 = vld [vmem:[%s5 + $0x38] sm:$0xff]
    %v208 = vld [vmem:[%s5 + $0x40] sm:$0xff]
    %v209 = vld [vmem:[%s5 + $0x48] sm:$0xff]
    %v210 = vld [vmem:[%s5 + $0x50] sm:$0xff]
    %v211 = vld [vmem:[%s5 + $0x58] sm:$0xff]
    %v212 = vld [vmem:[%s5 + $0x60] sm:$0xff]
    %v213 = vld [vmem:[%s5 + $0x68] sm:$0xff]
    %v214 = vld [vmem:[%s5 + $0x70] sm:$0xff]
    %v215 = vld [vmem:[%s5 + $0x78] sm:$0xff]
    %v216 = vld [vmem:[%s6] sm:$0xff]
    %v217 = vld [vmem:[%s6 + $0x8] sm:$0xff]
    %v218 = vld [vmem:[%s6 + $0x10] sm:$0xff]
    %v219 = vld [vmem:[%s6 + $0x18] sm:$0xff]
    %v220 = vld [vmem:[%s6 + $0x20] sm:$0xff]
    %v221 = vld [vmem:[%s6 + $0x28] sm:$0xff]
    %v222 = vld [vmem:[%s6 + $0x30] sm:$0xff]
    %v223 = vld [vmem:[%s6 + $0x38] sm:$0xff]
    %v224 = vld [vmem:[%s6 + $0x40] sm:$0xff]
    %v225 = vld [vmem:[%s6 + $0x48] sm:$0xff]
    %v226 = vld [vmem:[%s6 + $0x50] sm:$0xff]
    %v227 = vld [vmem:[%s6 + $0x58] sm:$0xff]
    %v228 = vld [vmem:[%s6 + $0x60] sm:$0xff]
    %v229 = vld [vmem:[%s6 + $0x68] sm:$0xff]
    %v230 = vld [vmem:[%s6 + $0x70] sm:$0xff]
    %v231 = vld [vmem:[%s6 + $0x78] sm:$0xff]
    %233 = vset.pattern.permute.xlu0 0
    %234 = vperm.xlu0 %233, %v216
    %v235 = vpop.permute.xlu0 %234
    %238 = vset.pattern.permute.xlu0 0
    %239 = vperm.xlu0 %238, %v217
    %v240 = vpop.permute.xlu0 %239
    %243 = vset.pattern.permute.xlu0 0
    %244 = vperm.xlu0 %243, %v218
    %v245 = vpop.permute.xlu0 %244
    %248 = vset.pattern.permute.xlu0 0
    %249 = vperm.xlu0 %248, %v219
    %v250 = vpop.permute.xlu0 %249
    %253 = vset.pattern.permute.xlu0 0
    %254 = vperm.xlu0 %253, %v220
    %v255 = vpop.permute.xlu0 %254
    %258 = vset.pattern.permute.xlu0 0
    %259 = vperm.xlu0 %258, %v221
    %v260 = vpop.permute.xlu0 %259
    %263 = vset.pattern.permute.xlu0 0
    %264 = vperm.xlu0 %263, %v222
    %v265 = vpop.permute.xlu0 %264
    %268 = vset.pattern.permute.xlu0 0
    %269 = vperm.xlu0 %268, %v223
    %v270 = vpop.permute.xlu0 %269
    %273 = vset.pattern.permute.xlu0 0
    %274 = vperm.xlu0 %273, %v224
    %v275 = vpop.permute.xlu0 %274
    %278 = vset.pattern.permute.xlu0 0
    %279 = vperm.xlu0 %278, %v225
    %v280 = vpop.permute.xlu0 %279
    %283 = vset.pattern.permute.xlu0 0
    %284 = vperm.xlu0 %283, %v226
    %v285 = vpop.permute.xlu0 %284
    %288 = vset.pattern.permute.xlu0 0
    %289 = vperm.xlu0 %288, %v227
    %v290 = vpop.permute.xlu0 %289
    %293 = vset.pattern.permute.xlu0 0
    %294 = vperm.xlu0 %293, %v228
    %v295 = vpop.permute.xlu0 %294
    %298 = vset.pattern.permute.xlu0 0
    %299 = vperm.xlu0 %298, %v229
    %v300 = vpop.permute.xlu0 %299
    %303 = vset.pattern.permute.xlu0 0
    %304 = vperm.xlu0 %303, %v230
    %v305 = vpop.permute.xlu0 %304
    %308 = vset.pattern.permute.xlu0 0
    %309 = vperm.xlu0 %308, %v231
    %v310 = vpop.permute.xlu0 %309
    %312 = vmatprep.subr.mxu0 0.0
    %313 = vmatpush1.xpose.msra.mxu0 %v199
    %314 = vmatprep.subr.mxu0 0.0
    %315 = vmatpush1.xpose.msra.mxu0 0.0
    %316 = vmatprep.subr.mxu0 0.0
    %317 = vmatpush1.xpose.msra.mxu0 0.0
    %318 = vmatprep.subr.mxu0 0.0
    %319 = vmatpush1.xpose.msra.mxu0 0.0
    %320 = vmatprep.subr.mxu0 0.0
    %321 = vmatpush1.xpose.msra.mxu0 0.0
    %322 = vmatprep.subr.mxu0 0.0
    %323 = vmatpush1.xpose.msra.mxu0 0.0
    %324 = vmatprep.subr.mxu0 0.0
    %325 = vmatpush1.xpose.msra.mxu0 0.0
    %326 = vmatprep.subr.mxu0 0.0
    %327 = vmatpush1.xpose.msra.mxu0 0.0
    %328 = vmatprep.subr.mxu0 0.0
    %329 = vmatpush1.xpose.msra.mxu0 0.0
    %330 = vmatprep.subr.mxu0 0.0
    %331 = vmatpush1.xpose.msra.mxu0 0.0
    %332 = vmatprep.subr.mxu0 0.0
    %333 = vmatpush1.xpose.msra.mxu0 0.0
    %334 = vmatprep.subr.mxu0 0.0
    %335 = vmatpush1.xpose.msra.mxu0 0.0
    %336 = vmatprep.subr.mxu0 0.0
    %337 = vmatpush1.xpose.msra.mxu0 0.0
    %338 = vmatprep.subr.mxu0 0.0
    %339 = vmatpush1.xpose.msra.mxu0 0.0
    %340 = vmatprep.subr.mxu0 0.0
    %341 = vmatpush1.xpose.msra.mxu0 0.0
    %342 = vmatprep.subr.mxu0 0.0
    %343 = vmatpush1.xpose.msra.mxu0 0.0
    %344 = vmatprep.subr.mxu0 0.0
    %345 = vmatpush1.xpose.msra.mxu0 0.0
    %346 = vmatprep.subr.mxu0 0.0
    %347 = vmatpush1.xpose.msra.mxu0 0.0
    %348 = vmatprep.subr.mxu0 0.0
    %349 = vmatpush1.xpose.msra.mxu0 0.0
    %350 = vmatprep.subr.mxu0 0.0
    %351 = vmatpush1.xpose.msra.mxu0 0.0
    %352 = vmatprep.subr.mxu0 0.0
    %353 = vmatpush1.xpose.msra.mxu0 0.0
    %354 = vmatprep.subr.mxu0 0.0
    %355 = vmatpush1.xpose.msra.mxu0 0.0
    %356 = vmatprep.subr.mxu0 0.0
    %357 = vmatpush1.xpose.msra.mxu0 0.0
    %358 = vmatprep.subr.mxu0 0.0
    %359 = vmatpush1.xpose.msra.mxu0 0.0
    %360 = vmatprep.subr.mxu0 0.0
    %361 = vmatpush1.xpose.msra.mxu0 0.0
    %362 = vmatprep.subr.mxu0 0.0
    %363 = vmatpush1.xpose.msra.mxu0 0.0
    %364 = vmatprep.subr.mxu0 0.0
    %365 = vmatpush1.xpose.msra.mxu0 0.0
    %366 = vmatprep.subr.mxu0 0.0
    %367 = vmatpush1.xpose.msra.mxu0 0.0
    %368 = vmatprep.subr.mxu0 0.0
    %369 = vmatpush1.xpose.msra.mxu0 0.0
    %370 = vmatprep.subr.mxu0 0.0
    %371 = vmatpush1.xpose.msra.mxu0 0.0
    %372 = vmatprep.subr.mxu0 0.0
    %373 = vmatpush1.xpose.msra.mxu0 0.0
    %374 = vmatprep.subr.mxu0 0.0
    %375 = vmatpush1.xpose.msra.mxu0 0.0
    %376 = vmatprep.mubr.f32.mxu0 0.0
    %377 = vmatmul.mubr.f32.gmra.mrb[0].mxu0 %v200
    %v378 = vpop.f32.mrb[0].mxu0
    %v379 = vadd.f32 %v235, %v378
    %v380 = vpop.f32.mrb[0].mxu0
    %381 = vmatprep.mubr.f32.mxu0 0.0
    %382 = vmatmul.mubr.f32.gmra.mrb[0].mxu0 %v201
    %v383 = vpop.f32.mrb[0].mxu0
    %v384 = vadd.f32 %v240, %v383
    %v385 = vpop.f32.mrb[0].mxu0
    %386 = vmatprep.mubr.f32.mxu0 0.0
    %387 = vmatmul.mubr.f32.gmra.mrb[0].mxu0 %v202
    %v388 = vpop.f32.mrb[0].mxu0
    %v389 = vadd.f32 %v245, %v388
    %v390 = vpop.f32.mrb[0].mxu0
    %391 = vmatprep.mubr.f32.mxu0 0.0
    %392 = vmatmul.mubr.f32.gmra.mrb[0].mxu0 %v203
    %v393 = vpop.f32.mrb[0].mxu0
    %v394 = vadd.f32 %v250, %v393
    %v395 = vpop.f32.mrb[0].mxu0
    %396 = vmatprep.mubr.f32.mxu0 0.0
    %397 = vmatmul.mubr.f32.gmra.mrb[0].mxu0 %v204
    %v398 = vpop.f32.mrb[0].mxu0
    %v399 = vadd.f32 %v255, %v398
    %v400 = vpop.f32.mrb[0].mxu0
    %401 = vmatprep.mubr.f32.mxu0 0.0
    %402 = vmatmul.mubr.f32.gmra.mrb[0].mxu0 %v205
    %v403 = vpop.f32.mrb[0].mxu0
    %v404 = vadd.f32 %v260, %v403
    %v405 = vpop.f32.mrb[0].mxu0
    %406 = vmatprep.mubr.f32.mxu0 0.0
    %407 = vmatmul.mubr.f32.gmra.mrb[0].mxu0 %v206
    %v408 = vpop.f32.mrb[0].mxu0
    %v409 = vadd.f32 %v265, %v408
    %v410 = vpop.f32.mrb[0].mxu0
    %411 = vmatprep.mubr.f32.mxu0 0.0
    %412 = vmatmul.mubr.f32.gmra.mrb[0].mxu0 %v207
    %v413 = vpop.f32.mrb[0].mxu0
    %v414 = vadd.f32 %v270, %v413
    %v415 = vpop.f32.mrb[0].mxu0
    %416 = vmatprep.mubr.f32.mxu0 0.0
    %417 = vmatmul.mubr.f32.gmra.mrb[0].mxu0 %v208
    %v418 = vpop.f32.mrb[0].mxu0
    %v419 = vadd.f32 %v275, %v418
    %v420 = vpop.f32.mrb[0].mxu0
    %421 = vmatprep.mubr.f32.mxu0 0.0
    %422 = vmatmul.mubr.f32.gmra.mrb[0].mxu0 %v209
    %v423 = vpop.f32.mrb[0].mxu0
    %v424 = vadd.f32 %v280, %v423
    %v425 = vpop.f32.mrb[0].mxu0
    %426 = vmatprep.mubr.f32.mxu0 0.0
    %427 = vmatmul.mubr.f32.gmra.mrb[0].mxu0 %v210
    %v428 = vpop.f32.mrb[0].mxu0
    %v429 = vadd.f32 %v285, %v428
    %v430 = vpop.f32.mrb[0].mxu0
    %431 = vmatprep.mubr.f32.mxu0 0.0
    %432 = vmatmul.mubr.f32.gmra.mrb[0].mxu0 %v211
    %v433 = vpop.f32.mrb[0].mxu0
    %v434 = vadd.f32 %v290, %v433
    %v435 = vpop.f32.mrb[0].mxu0
    %436 = vmatprep.mubr.f32.mxu0 0.0
    %437 = vmatmul.mubr.f32.gmra.mrb[0].mxu0 %v212
    %v438 = vpop.f32.mrb[0].mxu0
    %v439 = vadd.f32 %v295, %v438
    %v440 = vpop.f32.mrb[0].mxu0
    %441 = vmatprep.mubr.f32.mxu0 0.0
    %442 = vmatmul.mubr.f32.gmra.mrb[0].mxu0 %v213
    %v443 = vpop.f32.mrb[0].mxu0
    %v444 = vadd.f32 %v300, %v443
    %v445 = vpop.f32.mrb[0].mxu0
    %446 = vmatprep.mubr.f32.mxu0 0.0
    %447 = vmatmul.mubr.f32.gmra.mrb[0].mxu0 %v214
    %v448 = vpop.f32.mrb[0].mxu0
    %v449 = vadd.f32 %v305, %v448
    %v450 = vpop.f32.mrb[0].mxu0
    %451 = vmatprep.mubr.f32.mxu0 0.0
    %452 = vmatmul.mubr.f32.gmra.mrb[0].mxu0 %v215
    %v453 = vpop.f32.mrb[0].mxu0
    %v454 = vadd.f32 %v310, %v453
    %v455 = vpop.f32.mrb[0].mxu0
    %456 = vdwg.mxu0
    %v457 = vmax.f32 %v379, 0.0
    %v458 = vmax.f32 %v384, 0.0
    %v459 = vmax.f32 %v389, 0.0
    %v460 = vmax.f32 %v394, 0.0
    %v461 = vmax.f32 %v399, 0.0
    %v462 = vmax.f32 %v404, 0.0
    %v463 = vmax.f32 %v409, 0.0
    %v464 = vmax.f32 %v414, 0.0
    %v465 = vmax.f32 %v419, 0.0
    %v466 = vmax.f32 %v424, 0.0
    %v467 = vmax.f32 %v429, 0.0
    %v468 = vmax.f32 %v434, 0.0
    %v469 = vmax.f32 %v439, 0.0
    %v470 = vmax.f32 %v444, 0.0
    %v471 = vmax.f32 %v449, 0.0
    %v472 = vmax.f32 %v454, 0.0
    %v473 = vld [vmem:[%s7] sm:$0x1]
    %s474 = sld [smem:[#allocation2]]
    %v475 = vstv %s474
    %476 = vmatprep.subr.mxu0 0.0
    %477 = vmatpush1.msra.mxu0 %v457
    %478 = vmatprep.subr.mxu0 0.0
    %479 = vmatpush1.msra.mxu0 %v458
    %480 = vmatprep.subr.mxu0 0.0
    %481 = vmatpush1.msra.mxu0 %v459
    %482 = vmatprep.subr.mxu0 0.0
    %483 = vmatpush1.msra.mxu0 %v460
    %484 = vmatprep.subr.mxu0 0.0
    %485 = vmatpush1.msra.mxu0 %v461
    %486 = vmatprep.subr.mxu0 0.0
    %487 = vmatpush1.msra.mxu0 %v462
    %488 = vmatprep.subr.mxu0 0.0
    %489 = vmatpush1.msra.mxu0 %v463
    %490 = vmatprep.subr.mxu0 0.0
    %491 = vmatpush1.msra.mxu0 %v464
    %492 = vmatprep.subr.mxu0 0.0
    %493 = vmatpush1.msra.mxu0 %v465
    %494 = vmatprep.subr.mxu0 0.0
    %495 = vmatpush1.msra.mxu0 %v466
    %496 = vmatprep.subr.mxu0 0.0
    %497 = vmatpush1.msra.mxu0 %v467
    %498 = vmatprep.subr.mxu0 0.0
    %499 = vmatpush1.msra.mxu0 %v468
    %500 = vmatprep.subr.mxu0 0.0
    %501 = vmatpush1.msra.mxu0 %v469
    %502 = vmatprep.subr.mxu0 0.0
    %503 = vmatpush1.msra.mxu0 %v470
    %504 = vmatprep.subr.mxu0 0.0
    %505 = vmatpush1.msra.mxu0 %v471
    %506 = vmatprep.subr.mxu0 0.0
    %507 = vmatpush1.msra.mxu0 %v472
    %508 = vmatprep.subr.mxu0 0.0
    %509 = vmatpush1.msra.mxu0 0.0
    %510 = vmatprep.subr.mxu0 0.0
    %511 = vmatpush1.msra.mxu0 0.0
    %512 = vmatprep.subr.mxu0 0.0
    %513 = vmatpush1.msra.mxu0 0.0
    %514 = vmatprep.subr.mxu0 0.0
    %515 = vmatpush1.msra.mxu0 0.0
    %516 = vmatprep.subr.mxu0 0.0
    %517 = vmatpush1.msra.mxu0 0.0
    %518 = vmatprep.subr.mxu0 0.0
    %519 = vmatpush1.msra.mxu0 0.0
    %520 = vmatprep.subr.mxu0 0.0
    %521 = vmatpush1.msra.mxu0 0.0
    %522 = vmatprep.subr.mxu0 0.0
    %523 = vmatpush1.msra.mxu0 0.0
    %524 = vmatprep.subr.mxu0 0.0
    %525 = vmatpush1.msra.mxu0 0.0
    %526 = vmatprep.subr.mxu0 0.0
    %527 = vmatpush1.msra.mxu0 0.0
    %528 = vmatprep.subr.mxu0 0.0
    %529 = vmatpush1.msra.mxu0 0.0
    %530 = vmatprep.subr.mxu0 0.0
    %531 = vmatpush1.msra.mxu0 0.0
    %532 = vmatprep.subr.mxu0 0.0
    %533 = vmatpush1.msra.mxu0 0.0
    %534 = vmatprep.subr.mxu0 0.0
    %535 = vmatpush1.msra.mxu0 0.0
    %536 = vmatprep.subr.mxu0 0.0
    %537 = vmatpush1.msra.mxu0 0.0
    %538 = vmatprep.subr.mxu0 0.0
    %539 = vmatpush1.msra.mxu0 0.0
    %540 = vmatprep.mubr.f32.mxu0 0.0
    %541 = vmatmul.mubr.f32.gmra.mrb[0].mxu0 %v473
    %v542 = vpop.f32.mrb[0].mxu0
    %v543 = vadd.f32 %v475, %v542
    %v544 = vpop.f32.mrb[0].mxu0
    %545 = vdwg.mxu0
    %vm546 = vcmask 57344
    %547 = vst.msk [vmem:[#allocation3] sm:$0x1] %vm546, %v543
    // Predicated region
    $region38: #{tpu_custom_call.1} parent=1 // pred_check
      _
    $region39: #{tpu_custom_call.1} parent=1 // pred_check_branch
      %549 = sbr.rel (0) target = $region41
    $region40: #{tpu_custom_call.1} parent=1 // pred_region
      %s551 = ssub.s32 16, 16
      %552 = vsyncadd [#allocation4], %s551
      %s554 = sshll.u32 [#allocation3], 4
      %s555 = int_to_ptr.vmem [resolvable:$true] %s554
      %557 = dma.vmem_to_hbm [thread:$0]  %s555, 16, %s9, [#allocation4]
    $region41: #{tpu_custom_call.1} parent=1 // pred_fallthru
      _
    // Predicated region
    $region42: #{tpu_custom_call.1} parent=1 // pred_check
      _
    $region43: #{tpu_custom_call.1} parent=1 // pred_check_branch
      %559 = sbr.rel (0) target = $region45
    $region44: #{tpu_custom_call.1} parent=1 // pred_region
      %560 = dma.done [#allocation4], 16
    $region45: #{tpu_custom_call.1} parent=1 // pred_fallthru
      _
    %561 = vsyncpa [#allocation4], 1

</llo_original>
